<compile_context>
chip_gen: v6e
topology: v6e:2x2x1
jax: 0.10.0
libtpu: 0.0.40
codegen_flags: <defaults>
</compile_context>

<pallas_src>
from functools import partial

import jax
import jax.numpy as jnp
from jax import lax
from jax.experimental import pallas as pl
from jax.experimental.pallas import tpu as pltpu


def _convt_kernel(x_ref, w_ref, b_ref, o_ref):
    """One grid step = B images.

    x_ref : (B, H, W*Cin)        lane-dense input rows (VMEM)
    w_ref : (3, W*Cin, W*Cout)   banded row matrices, one per kh tap
    b_ref : (1, W*Cout)          bias tiled over W (f32)
    o_ref : (B, H, W*Cout)       lane-dense output rows
    """
    f32 = jnp.float32
    x = x_ref[...]                                  # (B, H, WCi)
    B, H, WCi = x.shape
    WCo = o_ref.shape[-1]

    # Per-image row shifts for the kh=0 / kh=2 taps (the H-direction halo).
    # Applied to x (64 lanes) with static slices + a zero row, entirely inside
    # each image's H block, so nothing leaks across batch elements.
    zrow = jnp.zeros((B, 1, WCi), x.dtype)
    x_dn = jnp.concatenate([zrow, x[:, :H - 1, :]], axis=1)   # row h sees x[h-1]
    x_up = jnp.concatenate([x[:, 1:, :], zrow], axis=1)       # row h sees x[h+1]

    # Flatten batch into the matmul M dimension (layout-free reshape: last dim
    # unchanged, H is a multiple of 8 so sublane tiling is preserved).
    x2 = x.reshape(B * H, WCi)
    xd2 = x_dn.reshape(B * H, WCi)
    xu2 = x_up.reshape(B * H, WCi)

    # Three independent MXU pushes into a single f32 accumulator
    # (no dependent shift matmuls, single result drain per tap).
    acc = jnp.dot(xd2, w_ref[0], preferred_element_type=f32)
    acc = acc + jnp.dot(x2, w_ref[1], preferred_element_type=f32)
    acc = acc + jnp.dot(xu2, w_ref[2], preferred_element_type=f32)
    acc = acc + b_ref[...].astype(f32)                         # (1, WCo) bcast

    o_ref[...] = acc.reshape(B, H, WCo).astype(o_ref.dtype)


def _build_row_matrices(w_t, W, dtype):
    """ConvTranspose2d weight (Cin, Cout, 3, 3) -> (3, W*Cin, W*Cout) banded
    matrices M such that (x_rows @ M[kh]) gives the per-kh contribution, with
    the W-direction zero padding folded into the band structure."""
    Cin, Cout, K, _ = w_t.shape
    # Equivalent-conv weights: w_conv[kh, kw, ic, oc] = w_t[ic, oc, K-1-kh, K-1-kw]
    w_conv = jnp.transpose(w_t[:, :, ::-1, ::-1], (2, 3, 0, 1))  # (3, 3, Cin, Cout)

    kh = jnp.arange(K)[:, None, None, None, None]
    kw = jnp.arange(K)[None, :, None, None, None]
    ic = jnp.arange(Cin)[None, None, :, None, None]
    wp = jnp.arange(W)[None, None, None, :, None]
    oc = jnp.arange(Cout)[None, None, None, None, :]
    vals = jnp.broadcast_to(w_conv[:, :, :, None, :], (K, K, Cin, W, Cout))

    # Padded input-column index p+1 = w + kw lies in [0, W+1]; indices are
    # unique so .set() is exact.  Dropping the two pad rows afterwards encodes
    # the zero padding for free.
    mpad = jnp.zeros((K, W + 2, Cin, W, Cout), w_t.dtype)
    mpad = mpad.at[kh, wp + kw, ic, wp, oc].set(vals)
    m = mpad[:, 1:W + 1]                                   # (3, W, Cin, W, Cout)
    return m.reshape(K, W * Cin, W * Cout).astype(dtype)


@partial(jax.jit, static_argnames=("compute_dtype", "out_dtype"))
def verse_channel_adapt_pallas(x_nchw, w_t, bias, *,
                               compute_dtype=jnp.float32, out_dtype=None):
    """x_nchw: (N, Cin, H, W); w_t: ConvTranspose2d weight (Cin, Cout, 3, 3);
    bias: (Cout,).  Returns (N, Cout, H, W) == nn.ConvTranspose2d(k=3,s=1,p=1).

    compute_dtype=jnp.bfloat16 is the recommended production setting on
    v5e/v6e/v7x (bf16-native MXU, halves HBM traffic; accumulation stays f32).
    The f32 default matches PyTorch float32 semantics."""
    N, Cin, H, W = x_nchw.shape
    Cout = w_t.shape[1]
    WCi, WCo = W * Cin, W * Cout
    out_dt = jnp.dtype(out_dtype) if out_dtype is not None else jnp.dtype(x_nchw.dtype)

    # ---- choose images-per-step so B*H ~ 256 rows, but keep >= 2 grid steps
    #      when N > 1 so both v7x TensorCores get work. ----
    rows_target = 256
    B = max(1, min(N, rows_target // max(H, 1)))
    num_steps = -(-N // B)
    if N > 1 and num_steps < 2:
        B = -(-N // 2)
        num_steps = -(-N // B)
    Npad = num_steps * B

    # NCHW -> lane-dense (N, H, W*Cin).  (Pure layout plumbing; prefer NHWC
    # end-to-end in the surrounding model to avoid this HBM round trip.)
    x_rows = jnp.transpose(x_nchw, (0, 2, 3, 1)).reshape(N, H, WCi)
    x_rows = x_rows.astype(compute_dtype)
    if Npad != N:
        x_rows = jnp.pad(x_rows, ((0, Npad - N), (0, 0), (0, 0)))

    w_rows = _build_row_matrices(w_t, W, compute_dtype)      # (3, W*Cin, W*Cout)
    b_rows = jnp.tile(bias.astype(jnp.float32), (W,)).reshape(1, WCo)

    itm = jnp.dtype(compute_dtype).itemsize
    cost = pl.CostEstimate(
        flops=2 * Npad * H * (3 * WCi) * WCo,
        transcendentals=0,
        bytes_accessed=(Npad * H * WCi * itm            # x
                        + 3 * WCi * WCo * itm           # band matrices
                        + WCo * 4                       # bias
                        + Npad * H * WCo * out_dt.itemsize),  # output
    )

    out_rows = pl.pallas_call(
        _convt_kernel,
        out_shape=jax.ShapeDtypeStruct((Npad, H, WCo), out_dt),
        grid_spec=pltpu.PrefetchScalarGridSpec(
            num_scalar_prefetch=0,
            grid=(num_steps,),
            in_specs=[
                pl.BlockSpec((B, H, WCi), lambda i: (i, 0, 0)),
                pl.BlockSpec((3, WCi, WCo), lambda i: (0, 0, 0)),
                pl.BlockSpec((1, WCo), lambda i: (0, 0)),
            ],
            out_specs=pl.BlockSpec((B, H, WCo), lambda i: (i, 0, 0)),
        ),
        compiler_params=pltpu.CompilerParams(
            dimension_semantics=("parallel",),
        ),
        cost_estimate=cost,
    )(x_rows, w_rows, b_rows)

    # (Npad, H, W*Cout) -> (N, Cout, H, W)
    out = out_rows[:N].reshape(N, H, W, Cout).transpose(0, 3, 1, 2)
    return out


def _reference(x_nchw, w_t, bias):
    """XLA reference: the equivalent regular conv (flipped kernel, OIHW)."""
    w_oihw = jnp.transpose(w_t[:, :, ::-1, ::-1], (1, 0, 2, 3))
    y = lax.conv_general_dilated(
        x_nchw, w_oihw, window_strides=(1, 1), padding=[(1, 1), (1, 1)],
        dimension_numbers=("NCHW", "OIHW", "NCHW"),
    )
    return y + bias[None, :, None, None]


if __name__ == "__main__":
    N, Cin, Cout, H, W = 2, 4, 8, 16, 16

    key = jax.random.PRNGKey(0)
    kx, kwt, kb = jax.random.split(key, 3)
    x = jax.random.normal(kx, (N, Cin, H, W), dtype=jnp.float32)
    # PyTorch ConvTranspose2d weight shape: (in_channels, out_channels, kH, kW)
    w_t = jax.random.normal(kwt, (Cin, Cout, 3, 3), dtype=jnp.float32) * 0.1
    bias = jax.random.normal(kb, (Cout,), dtype=jnp.float32) * 0.1

    ref = _reference(x, w_t, bias)

    # Full-precision path (matches PyTorch f32 semantics).
    out = jax.block_until_ready(verse_channel_adapt_pallas(x, w_t, bias))
    assert out.shape == (N, Cout, H, W)
    assert jnp.allclose(out, ref, rtol=1e-4, atol=1e-4)

    # Multi-image blocks + ragged batch (exercises B>1, per-image halo masking
    # and the batch-padding path).
    N2 = 5
    x2 = jax.random.normal(jax.random.PRNGKey(1), (N2, Cin, H, W), jnp.float32)
    out2 = jax.block_until_ready(verse_channel_adapt_pallas(x2, w_t, bias))
    assert jnp.allclose(out2, _reference(x2, w_t, bias), rtol=1e-4, atol=1e-4)

    # bf16 compute + bf16 writeback (recommended on v5e/v6e/v7x: halves the x,
    # band-matrix and output HBM streams; MXU is bf16-native, accumulation f32).
    out_bf16 = jax.block_until_ready(
        verse_channel_adapt_pallas(x, w_t, bias,
                                   compute_dtype=jnp.bfloat16,
                                   out_dtype=jnp.bfloat16))
    assert jnp.allclose(out_bf16.astype(jnp.float32), ref, rtol=3e-2, atol=3e-2)

    print("KERNEL_OK")
</pallas_src>

<mosaic_0001>
module attributes {stable_mosaic.version = 11 : i64} {
  func.func @_convt_kernel(%arg0: i32, %arg1: memref<1x16x64xf32, #tpu.memory_space<vmem>>, %arg2: memref<3x64x128xf32, #tpu.memory_space<vmem>>, %arg3: memref<1x128xf32, #tpu.memory_space<vmem>>, %arg4: memref<1x16x128xf32, #tpu.memory_space<vmem>>) attributes {dimension_semantics = [#tpu.dimension_semantics<parallel>], iteration_bounds = array<i64: 2>, scalar_prefetch = 0 : i64, scratch_operands = 0 : i64, tpu.core_type = #tpu.core_type<tc>, window_params = [{transform_indices = @transform_0, window_bounds = array<i64: 1, 16, 64>}, {pipeline_mode = #tpu.pipeline_mode<synchronous>, transform_indices = @transform_1, window_bounds = array<i64: 3, 64, 128>}, {pipeline_mode = #tpu.pipeline_mode<synchronous>, transform_indices = @transform_2, window_bounds = array<i64: 1, 128>}, {transform_indices = @transform_3, window_bounds = array<i64: 1, 16, 128>}]} {
    %c0 = arith.constant 0 : index
    %c0_0 = arith.constant 0 : index
    %c0_1 = arith.constant 0 : index
    %0 = vector.load %arg1[%c0, %c0_0, %c0_1] : memref<1x16x64xf32, #tpu.memory_space<vmem>>, vector<1x16x64xf32>
    %cst = arith.constant 0.000000e+00 : f32
    %1 = vector.broadcast %cst : f32 to vector<1x1x64xf32>
    %2 = vector.extract_strided_slice %0 {offsets = [0, 0, 0], sizes = [1, 15, 64], strides = [1, 1, 1]} : vector<1x16x64xf32> to vector<1x15x64xf32>
    %3 = tpu.concatenate %1, %2 in 1 : vector<1x1x64xf32>, vector<1x15x64xf32> -> vector<1x16x64xf32>
    %4 = vector.extract_strided_slice %0 {offsets = [0, 1, 0], sizes = [1, 15, 64], strides = [1, 1, 1]} : vector<1x16x64xf32> to vector<1x15x64xf32>
    %5 = tpu.concatenate %4, %1 in 1 : vector<1x15x64xf32>, vector<1x1x64xf32> -> vector<1x16x64xf32>
    %6 = vector.shape_cast %0 : vector<1x16x64xf32> to vector<16x64xf32>
    %7 = vector.shape_cast %3 : vector<1x16x64xf32> to vector<16x64xf32>
    %8 = vector.shape_cast %5 : vector<1x16x64xf32> to vector<16x64xf32>
    %c0_2 = arith.constant 0 : index
    %c0_3 = arith.constant 0 : index
    %c0_4 = arith.constant 0 : index
    %9 = vector.load %arg2[%c0_2, %c0_3, %c0_4] : memref<3x64x128xf32, #tpu.memory_space<vmem>>, vector<1x64x128xf32>
    %10 = vector.shape_cast %9 : vector<1x64x128xf32> to vector<64x128xf32>
    %cst_5 = arith.constant dense<0.000000e+00> : vector<16x128xf32>
    %11 = tpu.matmul %7, %10, %cst_5 {dimension_numbers = #tpu.dot_dimension_numbers<[1], [0], [0], [1], [0, 0, 1, 1], [], []>} : vector<16x64xf32>, vector<64x128xf32>, vector<16x128xf32> -> vector<16x128xf32>
    %c1 = arith.constant 1 : index
    %c0_6 = arith.constant 0 : index
    %c0_7 = arith.constant 0 : index
    %12 = vector.load %arg2[%c1, %c0_6, %c0_7] : memref<3x64x128xf32, #tpu.memory_space<vmem>>, vector<1x64x128xf32>
    %13 = vector.shape_cast %12 : vector<1x64x128xf32> to vector<64x128xf32>
    %cst_8 = arith.constant dense<0.000000e+00> : vector<16x128xf32>
    %14 = tpu.matmul %6, %13, %cst_8 {dimension_numbers = #tpu.dot_dimension_numbers<[1], [0], [0], [1], [0, 0, 1, 1], [], []>} : vector<16x64xf32>, vector<64x128xf32>, vector<16x128xf32> -> vector<16x128xf32>
    %15 = arith.addf %11, %14 : vector<16x128xf32>
    %c2 = arith.constant 2 : index
    %c0_9 = arith.constant 0 : index
    %c0_10 = arith.constant 0 : index
    %16 = vector.load %arg2[%c2, %c0_9, %c0_10] : memref<3x64x128xf32, #tpu.memory_space<vmem>>, vector<1x64x128xf32>
    %17 = vector.shape_cast %16 : vector<1x64x128xf32> to vector<64x128xf32>
    %cst_11 = arith.constant dense<0.000000e+00> : vector<16x128xf32>
    %18 = tpu.matmul %8, %17, %cst_11 {dimension_numbers = #tpu.dot_dimension_numbers<[1], [0], [0], [1], [0, 0, 1, 1], [], []>} : vector<16x64xf32>, vector<64x128xf32>, vector<16x128xf32> -> vector<16x128xf32>
    %19 = arith.addf %15, %18 : vector<16x128xf32>
    %c0_12 = arith.constant 0 : index
    %c0_13 = arith.constant 0 : index
    %20 = vector.load %arg3[%c0_12, %c0_13] : memref<1x128xf32, #tpu.memory_space<vmem>>, vector<1x128xf32>
    %21 = vector.broadcast %20 : vector<1x128xf32> to vector<16x128xf32>
    %22 = arith.addf %19, %21 : vector<16x128xf32>
    %23 = vector.shape_cast %22 : vector<16x128xf32> to vector<1x16x128xf32>
    %c0_14 = arith.constant 0 : index
    %c0_15 = arith.constant 0 : index
    %c0_16 = arith.constant 0 : index
    %24 = vector.load %arg4[%c0_14, %c0_15, %c0_16] : memref<1x16x128xf32, #tpu.memory_space<vmem>>, vector<1x16x128xf32>
    tpu.vector_store %arg4[%c0_14, %c0_15, %c0_16], %23 {strides = array<i32>} : memref<1x16x128xf32, #tpu.memory_space<vmem>>, vector<1x16x128xf32>,
    return
  }
  func.func @transform_0(%arg0: i32) -> (i32, i32, i32) {
    %c0_i32 = arith.constant 0 : i32
    %c0_i32_0 = arith.constant 0 : i32
    %c0_i32_1 = arith.constant 0 : i32
    return %arg0, %c0_i32, %c0_i32_0 : i32, i32, i32
  }
  func.func @transform_1(%arg0: i32) -> (i32, i32, i32) {
    %c0_i32 = arith.constant 0 : i32
    %c0_i32_0 = arith.constant 0 : i32
    %c0_i32_1 = arith.constant 0 : i32
    %c0_i32_2 = arith.constant 0 : i32
    return %c0_i32, %c0_i32_0, %c0_i32_1 : i32, i32, i32
  }
  func.func @transform_2(%arg0: i32) -> (i32, i32) {
    %c0_i32 = arith.constant 0 : i32
    %c0_i32_0 = arith.constant 0 : i32
    %c0_i32_1 = arith.constant 0 : i32
    return %c0_i32, %c0_i32_0 : i32, i32
  }
  func.func @transform_3(%arg0: i32) -> (i32, i32, i32) {
    %c0_i32 = arith.constant 0 : i32
    %c0_i32_0 = arith.constant 0 : i32
    %c0_i32_1 = arith.constant 0 : i32
    return %arg0, %c0_i32, %c0_i32_0 : i32, i32, i32
  }
}

</mosaic_0001>

<llo_original>
// kernel: tile.8
$region0: #{tile.8}
  #allocation0 [shape = 's32[1]{0}', space=sflag, size = 0x4, scoped, tag = 'scoped memory for tile.8']
  %s0 = inlined_call_operand.vmem [shape: f32[8], index: 0, kind: input, shape index: {}]
  %s1 = inlined_call_operand.vmem [shape: f32[16,8], index: 1, kind: output, shape index: {}]
  // Predicated region
  $region2: #{tile.8} parent=0 // pred_check
    _
  $region3: #{tile.8} parent=0 // pred_check_branch
    %3 = sbr.rel (0) target = $region5
  $region4: #{tile.8} parent=0 // pred_region
    _
  $region5: #{tile.8} parent=0 // pred_fallthru
    _
  %v4 = vld [vmem:[%s0] ss:$0 sm:$0xff]
  %5 = vst [vmem:[%s1] sm:$0xff] %v4
  %s6 = scalar_lea.vmem %s1, 8
  %7 = vst [vmem:[%s6] sm:$0xff] %v4

// kernel: tile.9
$region0: #{tile.9}
  %s0 = inlined_call_operand.vmem [shape: f32[16,8], index: 0, kind: input, shape index: {}]
  %s1 = inlined_call_operand.vmem [shape: f32[1,128], index: 1, kind: output, shape index: {}]
  $region1: #{tile.9} parent=0
    #allocation0 [shape = 'u8[4096]{0}', space=vmem, size = 0x1000, scoped, tag = 'scoped mem for output reshape']
    %v2 = vld [vmem:[%s0] sm:$0x1]
    %vm3 = vcmask 64512
    %4 = vst.msk [vmem:[#allocation0] sm:$0x1] %vm3, %v2
    %s5 = scalar_lea.vmem %s0, 15
    %v6 = vld [vmem:[%s5] sm:$0x1]
    %7 = vrot.lane.b32.xlu0 %v6, 120
    %v8 = vpop.permute.xlu0 %7
    %vm9 = vcmask 1048512
    %10 = vst.msk [vmem:[#allocation0] sm:$0x1] %vm9, %v8
    %s11 = scalar_lea.vmem %s0, 14
    %v12 = vld [vmem:[%s11] sm:$0x1]
    %13 = vrot.lane.b32.xlu0 %v12, 112
    %v14 = vpop.permute.xlu0 %13
    %vm15 = vcmask 982912
    %16 = vst.msk [vmem:[#allocation0] sm:$0x1] %vm15, %v14
    %s17 = scalar_lea.vmem %s0, 13
    %v18 = vld [vmem:[%s17] sm:$0x1]
    %19 = vrot.lane.b32.xlu0 %v18, 104
    %v20 = vpop.permute.xlu0 %19
    %vm21 = vcmask 917312
    %22 = vst.msk [vmem:[#allocation0] sm:$0x1] %vm21, %v20
    %s23 = scalar_lea.vmem %s0, 12
    %v24 = vld [vmem:[%s23] sm:$0x1]
    %25 = vrot.lane.b32.xlu0 %v24, 96
    %v26 = vpop.permute.xlu0 %25
    %vm27 = vcmask 851712
    %28 = vst.msk [vmem:[#allocation0] sm:$0x1] %vm27, %v26
    %s29 = scalar_lea.vmem %s0, 11
    %v30 = vld [vmem:[%s29] sm:$0x1]
    %31 = vrot.lane.b32.xlu0 %v30, 88
    %v32 = vpop.permute.xlu0 %31
    %vm33 = vcmask 786112
    %34 = vst.msk [vmem:[#allocation0] sm:$0x1] %vm33, %v32
    %s35 = scalar_lea.vmem %s0, 10
    %v36 = vld [vmem:[%s35] sm:$0x1]
    %37 = vrot.lane.b32.xlu0 %v36, 80
    %v38 = vpop.permute.xlu0 %37
    %vm39 = vcmask 720512
    %40 = vst.msk [vmem:[#allocation0] sm:$0x1] %vm39, %v38
    %s41 = scalar_lea.vmem %s0, 9
    %v42 = vld [vmem:[%s41] sm:$0x1]
    %43 = vrot.lane.b32.xlu0 %v42, 72
    %v44 = vpop.permute.xlu0 %43
    %vm45 = vcmask 654912
    %46 = vst.msk [vmem:[#allocation0] sm:$0x1] %vm45, %v44
    %s47 = scalar_lea.vmem %s0, 8
    %v48 = vld [vmem:[%s47] sm:$0x1]
    %49 = vrot.lane.b32.xlu0 %v48, 64
    %v50 = vpop.permute.xlu0 %49
    %vm51 = vcmask 589312
    %52 = vst.msk [vmem:[#allocation0] sm:$0x1] %vm51, %v50
    %s53 = scalar_lea.vmem %s0, 7
    %v54 = vld [vmem:[%s53] sm:$0x1]
    %55 = vrot.lane.b32.xlu0 %v54, 56
    %v56 = vpop.permute.xlu0 %55
    %vm57 = vcmask 523712
    %58 = vst.msk [vmem:[#allocation0] sm:$0x1] %vm57, %v56
    %s59 = scalar_lea.vmem %s0, 6
    %v60 = vld [vmem:[%s59] sm:$0x1]
    %61 = vrot.lane.b32.xlu0 %v60, 48
    %v62 = vpop.permute.xlu0 %61
    %vm63 = vcmask 458112
    %64 = vst.msk [vmem:[#allocation0] sm:$0x1] %vm63, %v62
    %s65 = scalar_lea.vmem %s0, 5
    %v66 = vld [vmem:[%s65] sm:$0x1]
    %67 = vrot.lane.b32.xlu0 %v66, 40
    %v68 = vpop.permute.xlu0 %67
    %vm69 = vcmask 392512
    %70 = vst.msk [vmem:[#allocation0] sm:$0x1] %vm69, %v68
    %s71 = scalar_lea.vmem %s0, 4
    %v72 = vld [vmem:[%s71] sm:$0x1]
    %73 = vrot.lane.b32.xlu0 %v72, 32
    %v74 = vpop.permute.xlu0 %73
    %vm75 = vcmask 326912
    %76 = vst.msk [vmem:[#allocation0] sm:$0x1] %vm75, %v74
    %s77 = scalar_lea.vmem %s0, 3
    %v78 = vld [vmem:[%s77] sm:$0x1]
    %79 = vrot.lane.b32.xlu0 %v78, 24
    %v80 = vpop.permute.xlu0 %79
    %vm81 = vcmask 261312
    %82 = vst.msk [vmem:[#allocation0] sm:$0x1] %vm81, %v80
    %s83 = scalar_lea.vmem %s0, 2
    %v84 = vld [vmem:[%s83] sm:$0x1]
    %85 = vrot.lane.b32.xlu0 %v84, 16
    %v86 = vpop.permute.xlu0 %85
    %vm87 = vcmask 195712
    %88 = vst.msk [vmem:[#allocation0] sm:$0x1] %vm87, %v86
    %s89 = scalar_lea.vmem %s0, 1
    %v90 = vld [vmem:[%s89] sm:$0x1]
    %91 = vrot.lane.b32.xlu0 %v90, 8
    %v92 = vpop.permute.xlu0 %91
    %vm93 = vcmask 130112
    %94 = vst.msk [vmem:[#allocation0] sm:$0x1] %vm93, %v92
    %s96 = sshll.u32 1, 1
    %s97 = ssub.s32 %s96, 1
    %v99 = vld [vmem:[#allocation0] sm:%s97]
    %s100 = sshll.u32 1, 1
    %s101 = ssub.s32 %s100, 1
    %102 = vst [vmem:[%s1] sm:%s101] %v99

// kernel: verse_channel_adapt_pallas.1
$region0: #{verse_channel_adapt_pallas.1}
  #allocation0 [shape = 'u32[]', space=smem, size = 0x4, offset = 0x4, fixed_abs, tag = 'smem constant byte address 0x4 - core index']
  #allocation1 [shape = 'u32[144,128]{1,0:T(1,128)}', space=vmem, size = 0x12000, scoped, tag = 'internal scratch']
  %s0 = inlined_call_operand.vmem [shape: f32[2,16,64], index: 0, kind: input, shape index: {}]
  %s1 = inlined_call_operand.vmem [shape: f32[3,64,128], index: 1, kind: input, shape index: {}]
  %s2 = inlined_call_operand.vmem [shape: f32[1,128], index: 2, kind: input, shape index: {}]
  %s3 = inlined_call_operand.vmem [shape: f32[2,16,128], index: 3, kind: output, shape index: {}]
  %s4 = sld [smem:[#allocation0]]
  $region45: #{verse_channel_adapt_pallas.1} parent=0
    _
  %s6 = ssub.s32 1, %s4
  %s7 = scalar_select 0, %s6, %s4
  loop: start=0, step=1, limit=4
  $region2: #{verse_channel_adapt_pallas.1} parent=0 // loop_pre_header
    _
  $region3: #{verse_channel_adapt_pallas.1} parent=0 // loop_header
    %s9 = sphi 0, %s13
    %p10 = scmp.ge.s32.totalorder %s9, 4
    %s19 = sphi 0, %s21
    %s22 = sphi 0, %s19
    %s23 = sphi 0, %s22
    %s39 = sphi 0, %s23
    %s43 = sphi 0, %s43
    %s45 = sphi 0, %s43
    %s46 = sphi 0, %s45
    %s60 = sphi 0, %s46
    %s64 = sphi 0, %s64
    %s66 = sphi 0, %s64
    %s67 = sphi 0, %s66
    %s81 = sphi 0, %s67
    %s87 = sphi 0, %s89
    %s90 = sphi 0, %s87
    %s91 = sphi 0, %s90
    %s107 = sphi 0, %s91
  $region4: #{verse_channel_adapt_pallas.1} parent=0 // loop_header_branch
    %12 = sbr.rel (%p10) target = $region8
  $region5: #{verse_channel_adapt_pallas.1} parent=0 // loop_body
    %s14 = ssub.s32 %s9, 1
    %s15 = ssub.s32 %s9, 2
    %s16 = sadd.s32 %s9, 1
    %s17 = ssub.s32 %s9, %s16
    %p18 = scmp.eq.s32.totalorder %s17, 0
    %s20 = sadd.s32 %s19, 1
    %s21 = scalar_select %p18, %s19, %s20
    %p24 = pneg %p18
    %p25 = scmp.eq.s32.totalorder %s9, 1
    %p26 = por %p24, %p25
    %p27 = scmp.ne.s32.totalorder %s19, %s22
    %p28 = scmp.eq.s32.totalorder %s9, 0
    %p29 = por %p27, %p28
    %p30 = scmp.ne.s32.totalorder %s19, %s22
    %p31 = scmp.eq.s32.totalorder %s14, 1
    %p32 = por %p30, %p31
    %p33 = scmp.ne.s32.totalorder %s22, %s23
    %p34 = scmp.eq.s32.totalorder %s14, 0
    %p35 = por %p33, %p34
    %p36 = scmp.ne.s32.totalorder %s22, %s23
    %p37 = scmp.eq.s32.totalorder %s15, 1
    %p38 = por %p36, %p37
    %p40 = scmp.ne.s32.totalorder %s23, %s39
    %p41 = scmp.eq.s32.totalorder %s15, 0
    %p42 = por %p40, %p41
    %s44 = sadd.s32 %s43, 1
    %p47 = scmp.eq.s32.totalorder %s9, 1
    %p48 = scmp.ne.s32.totalorder %s43, %s45
    %p49 = scmp.eq.s32.totalorder %s9, 0
    %p50 = por %p48, %p49
    %p51 = scmp.ne.s32.totalorder %s43, %s45
    %p52 = scmp.eq.s32.totalorder %s14, 1
    %p53 = por %p51, %p52
    %p54 = scmp.ne.s32.totalorder %s45, %s46
    %p55 = scmp.eq.s32.totalorder %s14, 0
    %p56 = por %p54, %p55
    %p57 = scmp.ne.s32.totalorder %s45, %s46
    %p58 = scmp.eq.s32.totalorder %s15, 1
    %p59 = por %p57, %p58
    %p61 = scmp.ne.s32.totalorder %s46, %s60
    %p62 = scmp.eq.s32.totalorder %s15, 0
    %p63 = por %p61, %p62
    %s65 = sadd.s32 %s64, 1
    %p68 = scmp.eq.s32.totalorder %s9, 1
    %p69 = scmp.ne.s32.totalorder %s64, %s66
    %p70 = scmp.eq.s32.totalorder %s9, 0
    %p71 = por %p69, %p70
    %p72 = scmp.ne.s32.totalorder %s64, %s66
    %p73 = scmp.eq.s32.totalorder %s14, 1
    %p74 = por %p72, %p73
    %p75 = scmp.ne.s32.totalorder %s66, %s67
    %p76 = scmp.eq.s32.totalorder %s14, 0
    %p77 = por %p75, %p76
    %p78 = scmp.ne.s32.totalorder %s66, %s67
    %p79 = scmp.eq.s32.totalorder %s15, 1
    %p80 = por %p78, %p79
    %p82 = scmp.ne.s32.totalorder %s67, %s81
    %p83 = scmp.eq.s32.totalorder %s15, 0
    %p84 = por %p82, %p83
    %s85 = ssub.s32 %s9, %s16
    %p86 = scmp.eq.s32.totalorder %s85, 0
    %s88 = sadd.s32 %s87, 1
    %s89 = scalar_select %p86, %s87, %s88
    %p92 = pneg %p86
    %p93 = scmp.eq.s32.totalorder %s9, 1
    %p94 = por %p92, %p93
    %p95 = scmp.ne.s32.totalorder %s87, %s90
    %p96 = scmp.eq.s32.totalorder %s9, 0
    %p97 = por %p95, %p96
    %p98 = scmp.ne.s32.totalorder %s87, %s90
    %p99 = scmp.eq.s32.totalorder %s14, 1
    %p100 = por %p98, %p99
    %p101 = scmp.ne.s32.totalorder %s90, %s91
    %p102 = scmp.eq.s32.totalorder %s14, 0
    %p103 = por %p101, %p102
    %p104 = scmp.ne.s32.totalorder %s90, %s91
    %p105 = scmp.eq.s32.totalorder %s15, 1
    %p106 = por %p104, %p105
    %p108 = scmp.ne.s32.totalorder %s91, %s107
    %p109 = scmp.eq.s32.totalorder %s15, 0
    %p110 = por %p108, %p109
    %p111 = scmp.le.s32.totalorder 1, %s9
    %p112 = scmp.lt.s32.totalorder %s9, 3
    %p113 = pnand %p111, %p112
    %p114 = pneg %p113
    // Predicated region
    $region9: #{verse_channel_adapt_pallas.1} parent=5 // pred_check
      _
    $region10: #{verse_channel_adapt_pallas.1} parent=5 // pred_check_branch
      %116 = sbr.rel (%p113) target = $region12
    $region11: #{verse_channel_adapt_pallas.1} parent=5 // pred_region
      %s117 = ssub.s32 %s9, 1
      // Predicated region
      $region13: #{verse_channel_adapt_pallas.1} parent=11 // pred_check
        %p118 = pneg %p56
      $region14: #{verse_channel_adapt_pallas.1} parent=11 // pred_check_branch
        %120 = sbr.rel (%p118) target = $region16
      $region15: #{verse_channel_adapt_pallas.1} parent=11 // pred_region
        _
      $region16: #{verse_channel_adapt_pallas.1} parent=11 // pred_fallthru
        _
      // Predicated region
      $region17: #{verse_channel_adapt_pallas.1} parent=11 // pred_check
        %p121 = pneg %p77
      $region18: #{verse_channel_adapt_pallas.1} parent=11 // pred_check_branch
        %123 = sbr.rel (%p121) target = $region20
      $region19: #{verse_channel_adapt_pallas.1} parent=11 // pred_region
        _
      $region20: #{verse_channel_adapt_pallas.1} parent=11 // pred_fallthru
        _
    $region12: #{verse_channel_adapt_pallas.1} parent=5 // pred_fallthru
      _
    %p124 = scmp.lt.s32.totalorder %s9, 2
    // Predicated region
    $region21: #{verse_channel_adapt_pallas.1} parent=5 // pred_check
      %p125 = pneg %p124
    $region22: #{verse_channel_adapt_pallas.1} parent=5 // pred_check_branch
      %127 = sbr.rel (%p125) target = $region24
    $region23: #{verse_channel_adapt_pallas.1} parent=5 // pred_region
      // Predicated region
      $region25: #{verse_channel_adapt_pallas.1} parent=23 // pred_check
        %p128 = pneg %p29
      $region26: #{verse_channel_adapt_pallas.1} parent=23 // pred_check_branch
        %130 = sbr.rel (%p128) target = $region28
      $region27: #{verse_channel_adapt_pallas.1} parent=23 // pred_region
        %p131 = scmp.lt.s32.totalorder %s9, 1
        %s132 = scalar_select %p131, %s9, 1
        %s133 = smul.addr %s132, 2
        %s134 = smul.addr %s133, 8
        %s135 = scalar_lea.vmem %s0, %s134
      $region28: #{verse_channel_adapt_pallas.1} parent=23 // pred_fallthru
        _
    $region24: #{verse_channel_adapt_pallas.1} parent=5 // pred_fallthru
      _
    %p136 = scmp.le.s32.totalorder 1, %s9
    %p137 = scmp.lt.s32.totalorder %s9, 3
    %p138 = pnand %p136, %p137
    %p139 = pneg %p138
    // Predicated region
    $region29: #{verse_channel_adapt_pallas.1} parent=5 // pred_check
      _
    $region30: #{verse_channel_adapt_pallas.1} parent=5 // pred_check_branch
      %141 = sbr.rel (%p138) target = $region32
    $region31: #{verse_channel_adapt_pallas.1} parent=5 // pred_region
      %s142 = ssub.s32 %s9, 1
      %p143 = scmp.lt.s32.totalorder %s14, 1
      %s144 = scalar_select %p143, %s14, 1
      %s145 = smul.addr %s144, 2
      %s146 = smul.addr %s145, 8
      %s147 = scalar_lea.vmem %s0, %s146
      %p148 = pneg %p35
      %p149 = pneg %p32
      %p150 = pneg %p56
      %p151 = pneg %p53
      %p152 = pneg %p77
      %p153 = pneg %p74
      %p154 = pneg %p103
      %p155 = pneg %p100
      %p156 = scmp.lt.s32.totalorder %s14, 1
      %s157 = scalar_select %p156, %s14, 1
      %s158 = smul.addr %s157, 2
      %s159 = smul.addr %s158, 8
      %s160 = scalar_lea.vmem %s3, %s159
      %p161 = scmp.lt.s32.totalorder %s14, 1
      %s162 = scalar_select %p161, %s14, 1
      %s163 = smul.addr %s162, 2
      %s164 = smul.addr %s163, 8
      %s165 = scalar_lea.vmem %s0, %s164
      %p166 = scmp.lt.s32.totalorder %s14, 1
      %s167 = scalar_select %p166, %s14, 1
      %s168 = smul.addr %s167, 2
      %s169 = smul.addr %s168, 8
      %s170 = scalar_lea.vmem %s3, %s169
      %v171 = vld [vmem:[%s165] sm:$0xff]
      %v172 = vld [vmem:[%s165 + $0x8] sm:$0xff]
      %vm175 = vcmask 1040384
      %v176 = vrot.slane %v171, 7
      %v177 = vrot.slane %v172, 7
      %v178 = vsel %vm175, %v176, %v177
      %v180 = vsel %vm175, 0.0, %v176
      %vm181 = vcmask 1046528
      %v182 = vrot.slane %v171, 1
      %v183 = vrot.slane %v172, 1
      %v184 = vsel %vm181, %v182, %v183
      %v186 = vsel %vm181, %v183, 0.0
      %v187 = vld [vmem:[%s1] sm:$0xff]
      %v188 = vld [vmem:[%s1 + $0x8] sm:$0xff]
      %v189 = vld [vmem:[%s1 + $0x10] sm:$0xff]
      %v190 = vld [vmem:[%s1 + $0x18] sm:$0xff]
      %v191 = vld [vmem:[%s1 + $0x20] sm:$0xff]
      %v192 = vld [vmem:[%s1 + $0x28] sm:$0xff]
      %v193 = vld [vmem:[%s1 + $0x30] sm:$0xff]
      %v194 = vld [vmem:[%s1 + $0x38] sm:$0xff]
      %s195 = scalar_lea.vmem %s1, 64
      %v196 = vld [vmem:[%s195] sm:$0xff]
      %v197 = vld [vmem:[%s195 + $0x8] sm:$0xff]
      %v198 = vld [vmem:[%s195 + $0x10] sm:$0xff]
      %v199 = vld [vmem:[%s195 + $0x18] sm:$0xff]
      %v200 = vld [vmem:[%s195 + $0x20] sm:$0xff]
      %v201 = vld [vmem:[%s195 + $0x28] sm:$0xff]
      %v202 = vld [vmem:[%s195 + $0x30] sm:$0xff]
      %v203 = vld [vmem:[%s195 + $0x38] sm:$0xff]
      %vm204 = vcmask 523264
      %v205 = vsel %vm204, %v171, 0
      %v207 = vsel %vm204, %v172, 0
      %209 = vmatprep.subr.mxu0 0.0
      %210 = vmatpush1.msra.mxu0 0.0
      %211 = vmatprep.subr.mxu0 0.0
      %212 = vmatpush1.msra.mxu0 0.0
      %213 = vmatprep.subr.mxu0 0.0
      %214 = vmatpush1.msra.mxu0 0.0
      %215 = vmatprep.subr.mxu0 0.0
      %216 = vmatpush1.msra.mxu0 0.0
      %217 = vmatprep.subr.mxu0 0.0
      %218 = vmatpush1.msra.mxu0 0.0
      %219 = vmatprep.subr.mxu0 0.0
      %220 = vmatpush1.msra.mxu0 0.0
      %221 = vmatprep.subr.mxu0 0.0
      %222 = vmatpush1.msra.mxu0 0.0
      %223 = vmatprep.subr.mxu0 0.0
      %224 = vmatpush1.msra.mxu0 0.0
      %225 = vmatprep.subr.mxu0 0.0
      %226 = vmatpush1.msra.mxu0 %v203
      %227 = vmatprep.subr.mxu0 0.0
      %228 = vmatpush1.msra.mxu0 %v202
      %229 = vmatprep.subr.mxu0 0.0
      %230 = vmatpush1.msra.mxu0 %v201
      %231 = vmatprep.subr.mxu0 0.0
      %232 = vmatpush1.msra.mxu0 %v200
      %233 = vmatprep.subr.mxu0 0.0
      %234 = vmatpush1.msra.mxu0 %v199
      %235 = vmatprep.subr.mxu0 0.0
      %236 = vmatpush1.msra.mxu0 %v198
      %237 = vmatprep.subr.mxu0 0.0
      %238 = vmatpush1.msra.mxu0 %v197
      %239 = vmatprep.subr.mxu0 0.0
      %240 = vmatpush1.msra.mxu0 %v196
      %241 = vmatprep.subr.mxu0 0.0
      %242 = vmatpush2.msra.mxu0 0.0
      %243 = vmatprep.subr.mxu0 0.0
      %244 = vmatpush2.msra.mxu0 0.0
      %245 = vmatprep.subr.mxu0 0.0
      %246 = vmatpush2.msra.mxu0 0.0
      %247 = vmatprep.subr.mxu0 0.0
      %248 = vmatpush2.msra.mxu0 0.0
      %249 = vmatprep.subr.mxu0 0.0
      %250 = vmatpush2.msra.mxu0 0.0
      %251 = vmatprep.subr.mxu0 0.0
      %252 = vmatpush2.msra.mxu0 0.0
      %253 = vmatprep.subr.mxu0 0.0
      %254 = vmatpush2.msra.mxu0 0.0
      %255 = vmatprep.subr.mxu0 0.0
      %256 = vmatpush2.msra.mxu0 0.0
      %257 = vmatprep.subr.mxu0 0.0
      %258 = vmatpush2.msra.mxu0 0.0
      %259 = vmatprep.subr.mxu0 0.0
      %260 = vmatpush2.msra.mxu0 0.0
      %261 = vmatprep.subr.mxu0 0.0
      %262 = vmatpush2.msra.mxu0 0.0
      %263 = vmatprep.subr.mxu0 0.0
      %264 = vmatpush2.msra.mxu0 0.0
      %265 = vmatprep.subr.mxu0 0.0
      %266 = vmatpush2.msra.mxu0 0.0
      %267 = vmatprep.subr.mxu0 0.0
      %268 = vmatpush2.msra.mxu0 0.0
      %269 = vmatprep.subr.mxu0 0.0
      %270 = vmatpush2.msra.mxu0 0.0
      %271 = vmatprep.subr.mxu0 0.0
      %272 = vmatpush2.msra.mxu0 0.0
      %273 = vmatprep.mubr.f32.mxu0 0.0
      %274 = vmatmul.mubr.f32.gmra.mxu0 %v205
      %v275 = vpop.f32.mrf.mxu0
      %v276 = vadd.f32 0.0, %v275
      %v277 = vpop.f32.mrf.mxu0
      %278 = vmatprep.mubr.f32.mxu0 0.0
      %279 = vmatmul.mubr.f32.gmra.mxu0 %v207
      %v280 = vpop.f32.mrf.mxu0
      %v281 = vadd.f32 0.0, %v280
      %v282 = vpop.f32.mrf.mxu0
      %283 = vdwg.mxu0
      %v285 = vsel %vm204, %v180, 0
      %v287 = vsel %vm204, %v178, 0
      %289 = vmatprep.subr.mxu0 0.0
      %290 = vmatpush1.msra.mxu0 0.0
      %291 = vmatprep.subr.mxu0 0.0
      %292 = vmatpush1.msra.mxu0 0.0
      %293 = vmatprep.subr.mxu0 0.0
      %294 = vmatpush1.msra.mxu0 0.0
      %295 = vmatprep.subr.mxu0 0.0
      %296 = vmatpush1.msra.mxu0 0.0
      %297 = vmatprep.subr.mxu0 0.0
      %298 = vmatpush1.msra.mxu0 0.0
      %299 = vmatprep.subr.mxu0 0.0
      %300 = vmatpush1.msra.mxu0 0.0
      %301 = vmatprep.subr.mxu0 0.0
      %302 = vmatpush1.msra.mxu0 0.0
      %303 = vmatprep.subr.mxu0 0.0
      %304 = vmatpush1.msra.mxu0 0.0
      %305 = vmatprep.subr.mxu0 0.0
      %306 = vmatpush1.msra.mxu0 %v194
      %307 = vmatprep.subr.mxu0 0.0
      %308 = vmatpush1.msra.mxu0 %v193
      %309 = vmatprep.subr.mxu0 0.0
      %310 = vmatpush1.msra.mxu0 %v192
      %311 = vmatprep.subr.mxu0 0.0
      %312 = vmatpush1.msra.mxu0 %v191
      %313 = vmatprep.subr.mxu0 0.0
      %314 = vmatpush1.msra.mxu0 %v190
      %315 = vmatprep.subr.mxu0 0.0
      %316 = vmatpush1.msra.mxu0 %v189
      %317 = vmatprep.subr.mxu0 0.0
      %318 = vmatpush1.msra.mxu0 %v188
      %319 = vmatprep.subr.mxu0 0.0
      %320 = vmatpush1.msra.mxu0 %v187
      %321 = vmatprep.subr.mxu0 0.0
      %322 = vmatpush2.msra.mxu0 0.0
      %323 = vmatprep.subr.mxu0 0.0
      %324 = vmatpush2.msra.mxu0 0.0
      %325 = vmatprep.subr.mxu0 0.0
      %326 = vmatpush2.msra.mxu0 0.0
      %327 = vmatprep.subr.mxu0 0.0
      %328 = vmatpush2.msra.mxu0 0.0
      %329 = vmatprep.subr.mxu0 0.0
      %330 = vmatpush2.msra.mxu0 0.0
      %331 = vmatprep.subr.mxu0 0.0
      %332 = vmatpush2.msra.mxu0 0.0
      %333 = vmatprep.subr.mxu0 0.0
      %334 = vmatpush2.msra.mxu0 0.0
      %335 = vmatprep.subr.mxu0 0.0
      %336 = vmatpush2.msra.mxu0 0.0
      %337 = vmatprep.subr.mxu0 0.0
      %338 = vmatpush2.msra.mxu0 0.0
      %339 = vmatprep.subr.mxu0 0.0
      %340 = vmatpush2.msra.mxu0 0.0
      %341 = vmatprep.subr.mxu0 0.0
      %342 = vmatpush2.msra.mxu0 0.0
      %343 = vmatprep.subr.mxu0 0.0
      %344 = vmatpush2.msra.mxu0 0.0
      %345 = vmatprep.subr.mxu0 0.0
      %346 = vmatpush2.msra.mxu0 0.0
      %347 = vmatprep.subr.mxu0 0.0
      %348 = vmatpush2.msra.mxu0 0.0
      %349 = vmatprep.subr.mxu0 0.0
      %350 = vmatpush2.msra.mxu0 0.0
      %351 = vmatprep.subr.mxu0 0.0
      %352 = vmatpush2.msra.mxu0 0.0
      %353 = vmatprep.mubr.f32.mxu0 0.0
      %354 = vmatmul.mubr.f32.gmra.mxu0 %v285
      %v355 = vpop.f32.mrf.mxu0
      %v356 = vadd.f32 %v276, %v355
      %v357 = vpop.f32.mrf.mxu0
      %358 = vmatprep.mubr.f32.mxu0 0.0
      %359 = vmatmul.mubr.f32.gmra.mxu0 %v287
      %v360 = vpop.f32.mrf.mxu0
      %v361 = vadd.f32 %v281, %v360
      %v362 = vpop.f32.mrf.mxu0
      %363 = vdwg.mxu0
      %s364 = scalar_lea.vmem %s1, 128
      %v365 = vld [vmem:[%s364] sm:$0xff]
      %v366 = vld [vmem:[%s364 + $0x8] sm:$0xff]
      %v367 = vld [vmem:[%s364 + $0x10] sm:$0xff]
      %v368 = vld [vmem:[%s364 + $0x18] sm:$0xff]
      %v369 = vld [vmem:[%s364 + $0x20] sm:$0xff]
      %v370 = vld [vmem:[%s364 + $0x28] sm:$0xff]
      %v371 = vld [vmem:[%s364 + $0x30] sm:$0xff]
      %v372 = vld [vmem:[%s364 + $0x38] sm:$0xff]
      %v373 = vsel %vm204, %v184, 0
      %v376 = vsel %vm204, %v186, 0
      %378 = vmatprep.subr.mxu0 0.0
      %379 = vmatpush1.msra.mxu0 0.0
      %380 = vmatprep.subr.mxu0 0.0
      %381 = vmatpush1.msra.mxu0 0.0
      %382 = vmatprep.subr.mxu0 0.0
      %383 = vmatpush1.msra.mxu0 0.0
      %384 = vmatprep.subr.mxu0 0.0
      %385 = vmatpush1.msra.mxu0 0.0
      %386 = vmatprep.subr.mxu0 0.0
      %387 = vmatpush1.msra.mxu0 0.0
      %388 = vmatprep.subr.mxu0 0.0
      %389 = vmatpush1.msra.mxu0 0.0
      %390 = vmatprep.subr.mxu0 0.0
      %391 = vmatpush1.msra.mxu0 0.0
      %392 = vmatprep.subr.mxu0 0.0
      %393 = vmatpush1.msra.mxu0 0.0
      %394 = vmatprep.subr.mxu0 0.0
      %395 = vmatpush1.msra.mxu0 %v372
      %396 = vmatprep.subr.mxu0 0.0
      %397 = vmatpush1.msra.mxu0 %v371
      %398 = vmatprep.subr.mxu0 0.0
      %399 = vmatpush1.msra.mxu0 %v370
      %400 = vmatprep.subr.mxu0 0.0
      %401 = vmatpush1.msra.mxu0 %v369
      %402 = vmatprep.subr.mxu0 0.0
      %403 = vmatpush1.msra.mxu0 %v368
      %404 = vmatprep.subr.mxu0 0.0
      %405 = vmatpush1.msra.mxu0 %v367
      %406 = vmatprep.subr.mxu0 0.0
      %407 = vmatpush1.msra.mxu0 %v366
      %408 = vmatprep.subr.mxu0 0.0
      %409 = vmatpush1.msra.mxu0 %v365
      %410 = vmatprep.subr.mxu0 0.0
      %411 = vmatpush2.msra.mxu0 0.0
      %412 = vmatprep.subr.mxu0 0.0
      %413 = vmatpush2.msra.mxu0 0.0
      %414 = vmatprep.subr.mxu0 0.0
      %415 = vmatpush2.msra.mxu0 0.0
      %416 = vmatprep.subr.mxu0 0.0
      %417 = vmatpush2.msra.mxu0 0.0
      %418 = vmatprep.subr.mxu0 0.0
      %419 = vmatpush2.msra.mxu0 0.0
      %420 = vmatprep.subr.mxu0 0.0
      %421 = vmatpush2.msra.mxu0 0.0
      %422 = vmatprep.subr.mxu0 0.0
      %423 = vmatpush2.msra.mxu0 0.0
      %424 = vmatprep.subr.mxu0 0.0
      %425 = vmatpush2.msra.mxu0 0.0
      %426 = vmatprep.subr.mxu0 0.0
      %427 = vmatpush2.msra.mxu0 0.0
      %428 = vmatprep.subr.mxu0 0.0
      %429 = vmatpush2.msra.mxu0 0.0
      %430 = vmatprep.subr.mxu0 0.0
      %431 = vmatpush2.msra.mxu0 0.0
      %432 = vmatprep.subr.mxu0 0.0
      %433 = vmatpush2.msra.mxu0 0.0
      %434 = vmatprep.subr.mxu0 0.0
      %435 = vmatpush2.msra.mxu0 0.0
      %436 = vmatprep.subr.mxu0 0.0
      %437 = vmatpush2.msra.mxu0 0.0
      %438 = vmatprep.subr.mxu0 0.0
      %439 = vmatpush2.msra.mxu0 0.0
      %440 = vmatprep.subr.mxu0 0.0
      %441 = vmatpush2.msra.mxu0 0.0
      %442 = vmatprep.mubr.f32.mxu0 0.0
      %443 = vmatmul.mubr.f32.gmra.mxu0 %v373
      %v444 = vpop.f32.mrf.mxu0
      %v445 = vadd.f32 0.0, %v444
      %v446 = vpop.f32.mrf.mxu0
      %447 = vmatprep.mubr.f32.mxu0 0.0
      %448 = vmatmul.mubr.f32.gmra.mxu0 %v376
      %v449 = vpop.f32.mrf.mxu0
      %v450 = vadd.f32 0.0, %v449
      %v451 = vpop.f32.mrf.mxu0
      %452 = vdwg.mxu0
      %v453 = vadd.f32 %v356, %v445
      %v454 = vadd.f32 %v361, %v450
      %v455 = vld [vmem:[%s2] sm:$0x1]
      %v457 = vlaneseq
      %v458 = vshrl.u32 %v457, 7
      %v459 = vsub.s32 0, %v458
      %v460 = vrot.slane %v455, %v459
      %v462 = vadd.f32 %v453, %v460
      %v463 = vadd.f32 %v454, %v460
      %464 = vst [vmem:[%s170] sm:$0xff] %v462
      %465 = vst [vmem:[%s170 + $0x8] sm:$0xff] %v463
      %p466 = scmp.lt.s32.totalorder %s14, 1
      %s467 = scalar_select %p466, %s14, 1
      %s468 = smul.addr %s467, 2
      %s469 = smul.addr %s468, 8
      %s470 = scalar_lea.vmem %s3, %s469
      // Predicated region
      $region33: #{verse_channel_adapt_pallas.1} parent=31 // pred_check
        %p471 = pneg %p100
      $region34: #{verse_channel_adapt_pallas.1} parent=31 // pred_check_branch
        %473 = sbr.rel (%p471) target = $region36
      $region35: #{verse_channel_adapt_pallas.1} parent=31 // pred_region
        _
      $region36: #{verse_channel_adapt_pallas.1} parent=31 // pred_fallthru
        _
    $region32: #{verse_channel_adapt_pallas.1} parent=5 // pred_fallthru
      _
    %p474 = scmp.le.s32.totalorder 2, %s9
    // Predicated region
    $region37: #{verse_channel_adapt_pallas.1} parent=5 // pred_check
      %p475 = pneg %p474
    $region38: #{verse_channel_adapt_pallas.1} parent=5 // pred_check_branch
      %477 = sbr.rel (%p475) target = $region40
    $region39: #{verse_channel_adapt_pallas.1} parent=5 // pred_region
      %s478 = ssub.s32 %s9, 2
      // Predicated region
      $region41: #{verse_channel_adapt_pallas.1} parent=39 // pred_check
        %p479 = pneg %p106
      $region42: #{verse_channel_adapt_pallas.1} parent=39 // pred_check_branch
        %481 = sbr.rel (%p479) target = $region44
      $region43: #{verse_channel_adapt_pallas.1} parent=39 // pred_region
        %p482 = scmp.lt.s32.totalorder %s15, 1
        %s483 = scalar_select %p482, %s15, 1
        %s484 = smul.addr %s483, 2
        %s485 = smul.addr %s484, 8
        %s486 = scalar_lea.vmem %s3, %s485
      $region44: #{verse_channel_adapt_pallas.1} parent=39 // pred_fallthru
        _
    $region40: #{verse_channel_adapt_pallas.1} parent=5 // pred_fallthru
      _
  $region6: #{verse_channel_adapt_pallas.1} parent=0 // loop_footer
    %s13 = sadd.s32 1, %s9
  $region7: #{verse_channel_adapt_pallas.1} parent=0 // loop_footer_branch
    %8 = sbr.rel target = $region3
  $region8: #{verse_channel_adapt_pallas.1} parent=0 // loop_exit
    _

</llo_original>
